<compile_context>
chip_gen: v6e
topology: v6e:2x2x1
jax: 0.10.0
libtpu: 0.0.40
codegen_flags: <defaults>
</compile_context>

<pallas_src>
import functools

import jax
import jax.numpy as jnp
from jax.experimental import pallas as pl
from jax.experimental.pallas import tpu as pltpu


_SLAB_CAP = 8 << 20      # target per-grid-step slab (padded VMEM bytes)
_VMEM_LIMIT = 48 << 20   # 2x in + 2x out slabs + weight + scratch < v7x 64 MiB


# ---------------------------------------------------------------------------
# Fused single-pass kernel (read x once, write out once).
# ---------------------------------------------------------------------------
def _fused_kernel(x_ref, w_ref, o_ref, *, inv_hw):
    # x_ref: (bf, C, HW)   w_ref: (C, C)   o_ref: (bf, C, HW)
    x = x_ref[...]
    # Global average pool over the (lane) spatial axis, f32 accumulation.
    # HW is the full logical extent, so Mosaic masks any padded lanes.
    avg = jnp.sum(x.astype(jnp.float32), axis=-1) * inv_hw            # (bf, C)
    w = w_ref[...].astype(jnp.float32)                                # (Cout, Cin)
    # 1x1 conv == per-sample channel-mixing matvec on the MXU (free VLIW slot).
    s = jax.lax.dot_general(
        avg, w, (((1,), (1,)), ((), ())),
        precision=jax.lax.Precision.HIGHEST,
        preferred_element_type=jnp.float32)                           # (bf, C)
    gate = jax.nn.sigmoid(s)                                          # (bf, C)
    o_ref[...] = (x * gate[:, :, None].astype(x.dtype)).astype(o_ref.dtype)


# ---------------------------------------------------------------------------
# Split fallback kernels (oversized single-sample slabs).
# ---------------------------------------------------------------------------
def _pool_kernel(x_ref, o_ref, *, inv_hw):
    # x_ref: (1, tc, HW) -> o_ref: (1, tc, 1) per-channel means (f32).
    o_ref[0] = (jnp.sum(x_ref[0].astype(jnp.float32), axis=-1, keepdims=True)
                * inv_hw)


def _scale_kernel(x_ref, g_ref, o_ref):
    # x_ref: (1, tc, HW)   g_ref: (1, tc, 1)   o_ref: (1, tc, HW)
    x = x_ref[0]
    o_ref[0] = (x * g_ref[0].astype(x.dtype)).astype(o_ref.dtype)


# ---------------------------------------------------------------------------
# Tiling heuristics.
# ---------------------------------------------------------------------------
def _round_up(v, m):
    return -(-v // m) * m


def _padded_sample_bytes(c, hw, itemsize):
    # VMEM footprint of one sample's (C, HW) slice after (sublane, lane) tiling.
    sub = 32 // itemsize                 # 8 rows f32, 16 bf16, 32 int8
    return _round_up(c, sub) * _round_up(hw, 128) * itemsize


def _pick_fold(n, c, hw, itemsize, slab_cap):
    """Number of samples folded into the leading block dim per grid step, or
    None if even a single sample exceeds the slab budget (-> split pipeline)."""
    per_sample = _padded_sample_bytes(c, hw, itemsize)
    valid = [f for f in range(1, n + 1)
             if n % f == 0 and f * per_sample <= slab_cap]
    if not valid:
        return None
    # Prefer G = n // f even (both v7x TensorCores get work via the "parallel"
    # grid axis), then G > 1, then the largest fold (per-step overhead).
    return max(valid, key=lambda f: ((n // f) % 2 == 0, (n // f) > 1, f))


def _pick_channel_tile(c, hw, itemsize, slab_cap):
    cands = [d for d in range(1, c + 1) if c % d == 0 and (d % 8 == 0 or d == c)]
    valid = [d for d in cands if _padded_sample_bytes(d, hw, itemsize) <= slab_cap]
    return max(valid) if valid else min(cands)


# ---------------------------------------------------------------------------
# pallas_call wrappers.
# ---------------------------------------------------------------------------
def _fused_call(x, w, bf):
    n, c, hw = x.shape
    g = n // bf
    return pl.pallas_call(
        functools.partial(_fused_kernel, inv_hw=1.0 / hw),
        out_shape=jax.ShapeDtypeStruct((n, c, hw), x.dtype),
        grid_spec=pltpu.PrefetchScalarGridSpec(
            num_scalar_prefetch=0,
            grid=(g,),
            in_specs=[
                pl.BlockSpec((bf, c, hw), lambda i: (i, 0, 0)),
                pl.BlockSpec((c, c), lambda i: (0, 0)),   # resident weight
            ],
            out_specs=pl.BlockSpec((bf, c, hw), lambda i: (i, 0, 0)),
        ),
        compiler_params=pltpu.CompilerParams(
            dimension_semantics=("parallel",),
            vmem_limit_bytes=_VMEM_LIMIT,
        ),
    )(x, w)


def _split_call(x, w, slab_cap):
    # Gate-precompute pass + freely tiled scale pass, for samples whose
    # (C, HW) slab does not fit the fused kernel's VMEM budget.
    n, c, hw = x.shape
    tc = _pick_channel_tile(c, hw, x.dtype.itemsize, slab_cap)
    grid = (n, c // tc)
    params = pltpu.CompilerParams(
        dimension_semantics=("parallel", "parallel"),
        vmem_limit_bytes=_VMEM_LIMIT,
    )
    # TODO(synk): also tile HW here if a single (8, HW) row-group ever exceeds
    # the VMEM budget (HW > ~1.5M elements).
    avg = pl.pallas_call(
        functools.partial(_pool_kernel, inv_hw=1.0 / hw),
        out_shape=jax.ShapeDtypeStruct((n, c, 1), jnp.float32),
        grid_spec=pltpu.PrefetchScalarGridSpec(
            num_scalar_prefetch=0,
            grid=grid,
            in_specs=[pl.BlockSpec((1, tc, hw), lambda i, j: (i, j, 0))],
            out_specs=pl.BlockSpec((1, tc, 1), lambda i, j: (i, j, 0)),
        ),
        compiler_params=params,
    )(x)
    # Tiny (N, C) x (C, C) channel mix + sigmoid: negligible HBM traffic; full
    # f32 precision outside the kernel.
    s = jax.lax.dot_general(avg[:, :, 0], w.astype(jnp.float32),
                            (((1,), (1,)), ((), ())),
                            precision=jax.lax.Precision.HIGHEST)
    gate = jax.nn.sigmoid(s)[:, :, None]                    # (N, C, 1), f32
    return pl.pallas_call(
        _scale_kernel,
        out_shape=jax.ShapeDtypeStruct((n, c, hw), x.dtype),
        grid_spec=pltpu.PrefetchScalarGridSpec(
            num_scalar_prefetch=0,
            grid=grid,
            in_specs=[pl.BlockSpec((1, tc, hw), lambda i, j: (i, j, 0)),
                      pl.BlockSpec((1, tc, 1), lambda i, j: (i, j, 0))],
            out_specs=pl.BlockSpec((1, tc, hw), lambda i, j: (i, j, 0)),
        ),
        compiler_params=params,
    )(x, gate)


def channel_operation(x_nchw, w, *, slab_cap=_SLAB_CAP):
    """x_nchw: (N, C, H, W); w: (C, C) = nn.Conv2d(dim, dim, 1, bias=False) weight."""
    n, c, h, wd = x_nchw.shape
    hw = h * wd
    x = x_nchw.reshape(n, c, hw)     # free reshape: flattened spatial on lanes
    bf = _pick_fold(n, c, hw, x.dtype.itemsize, slab_cap)
    if bf is not None:
        out = _fused_call(x, w, bf)
    else:
        out = _split_call(x, w, slab_cap)
    return out.reshape(n, c, h, wd)


# ---------------------------------------------------------------------------
# Pure-JAX reference and self-test.
# ---------------------------------------------------------------------------
def reference(x_nchw, w):
    avg = jnp.mean(x_nchw.astype(jnp.float32), axis=(2, 3))           # (N, C)
    s = jax.lax.dot_general(avg, w.astype(jnp.float32),
                            (((1,), (1,)), ((), ())),
                            precision=jax.lax.Precision.HIGHEST)
    gate = jax.nn.sigmoid(s)[:, :, None, None].astype(x_nchw.dtype)
    return x_nchw * gate


if __name__ == "__main__":
    key = jax.random.PRNGKey(0)
    k1, k2, k3, k4 = jax.random.split(key, 4)

    # Case 1: module-sized example (batch=2, channels=4, 16x16) -> fused path,
    # bf=1 / G=2 (both v7x cores busy), HW=256 lane-dense.
    N, C, H, W = 2, 4, 16, 16
    x = jax.random.normal(k1, (N, C, H, W), dtype=jnp.float32)
    w = jax.random.normal(k2, (C, C), dtype=jnp.float32) / jnp.sqrt(C)
    out = jax.block_until_ready(channel_operation(x, w))
    assert out.shape == (N, C, H, W)
    assert jnp.allclose(out, reference(x, w), atol=1e-5, rtol=1e-5), "case 1 mismatch"

    # Case 2: unaligned HW (8*8 = 64 lanes -> masked final store, no pad/slice)
    # and a larger channel mix on the MXU at HIGHEST precision.
    N2, C2, H2, W2 = 2, 128, 8, 8
    x2 = jax.random.normal(k3, (N2, C2, H2, W2), dtype=jnp.float32)
    w2 = jax.random.normal(k4, (C2, C2), dtype=jnp.float32) / jnp.sqrt(C2)
    out2 = jax.block_until_ready(channel_operation(x2, w2))
    assert jnp.allclose(out2, reference(x2, w2), atol=1e-5, rtol=1e-5), "case 2 mismatch"

    # Case 3: force the split (pool pass + scale pass) fallback that is used
    # when a single sample's (C, HW) slab would not fit the VMEM budget.
    out3 = jax.block_until_ready(channel_operation(x2, w2, slab_cap=32 << 10))
    assert jnp.allclose(out3, reference(x2, w2), atol=1e-5, rtol=1e-5), "case 3 mismatch"

    print("KERNEL_OK")
</pallas_src>

<mosaic_0001>
module attributes {stable_mosaic.version = 11 : i64} {
  func.func @_fused_kernel(%arg0: i32, %arg1: memref<1x4x256xf32, #tpu.memory_space<vmem>>, %arg2: memref<4x4xf32, #tpu.memory_space<vmem>>, %arg3: memref<1x4x256xf32, #tpu.memory_space<vmem>>) attributes {dimension_semantics = [#tpu.dimension_semantics<parallel>], iteration_bounds = array<i64: 2>, scalar_prefetch = 0 : i64, scratch_operands = 0 : i64, tpu.core_type = #tpu.core_type<tc>, window_params = [{transform_indices = @transform_0, window_bounds = array<i64: 1, 4, 256>}, {pipeline_mode = #tpu.pipeline_mode<synchronous>, transform_indices = @transform_1, window_bounds = array<i64: 4, 4>}, {transform_indices = @transform_2, window_bounds = array<i64: 1, 4, 256>}]} {
    %c0 = arith.constant 0 : index
    %c0_0 = arith.constant 0 : index
    %c0_1 = arith.constant 0 : index
    %0 = vector.load %arg1[%c0, %c0_0, %c0_1] : memref<1x4x256xf32, #tpu.memory_space<vmem>>, vector<1x4x256xf32>
    %cst = arith.constant dense<0.000000e+00> : vector<1x4xf32>
    %1 = vector.multi_reduction <add>, %0, %cst [2] : vector<1x4x256xf32> to vector<1x4xf32>
    %cst_2 = arith.constant 3.906250e-03 : f32
    %2 = vector.broadcast %cst_2 : f32 to vector<1x4xf32>
    %3 = arith.mulf %1, %2 : vector<1x4xf32>
    %c0_3 = arith.constant 0 : index
    %c0_4 = arith.constant 0 : index
    %4 = vector.load %arg2[%c0_3, %c0_4] : memref<4x4xf32, #tpu.memory_space<vmem>>, vector<4x4xf32>
    %cst_5 = arith.constant dense<0.000000e+00> : vector<1x4xf32>
    %5 = tpu.matmul %3, %4, %cst_5 {dimension_numbers = #tpu.dot_dimension_numbers<[1], [1], [0], [0], [0, 0, 1, 0], [], []>, precision = #tpu.contract_precision<fp32>} : vector<1x4xf32>, vector<4x4xf32>, vector<1x4xf32> -> vector<1x4xf32>
    %6 = arith.negf %5 : vector<1x4xf32>
    %7 = math.exp %6 : vector<1x4xf32>
    %cst_6 = arith.constant 1.000000e+00 : f32
    %8 = vector.broadcast %cst_6 : f32 to vector<1x4xf32>
    %9 = arith.addf %8, %7 : vector<1x4xf32>
    %10 = arith.divf %8, %9 : vector<1x4xf32>
    %11 = vector.shape_cast %10 : vector<1x4xf32> to vector<1x4x1xf32>
    %12 = vector.broadcast %11 : vector<1x4x1xf32> to vector<1x4x256xf32>
    %13 = arith.mulf %0, %12 : vector<1x4x256xf32>
    %c0_7 = arith.constant 0 : index
    %c0_8 = arith.constant 0 : index
    %c0_9 = arith.constant 0 : index
    %14 = vector.load %arg3[%c0_7, %c0_8, %c0_9] : memref<1x4x256xf32, #tpu.memory_space<vmem>>, vector<1x4x256xf32>
    tpu.vector_store %arg3[%c0_7, %c0_8, %c0_9], %13 {strides = array<i32>} : memref<1x4x256xf32, #tpu.memory_space<vmem>>, vector<1x4x256xf32>,
    return
  }
  func.func @transform_0(%arg0: i32) -> (i32, i32, i32) {
    %c0_i32 = arith.constant 0 : i32
    %c0_i32_0 = arith.constant 0 : i32
    %c0_i32_1 = arith.constant 0 : i32
    return %arg0, %c0_i32, %c0_i32_0 : i32, i32, i32
  }
  func.func @transform_1(%arg0: i32) -> (i32, i32) {
    %c0_i32 = arith.constant 0 : i32
    %c0_i32_0 = arith.constant 0 : i32
    %c0_i32_1 = arith.constant 0 : i32
    return %c0_i32, %c0_i32_0 : i32, i32
  }
  func.func @transform_2(%arg0: i32) -> (i32, i32, i32) {
    %c0_i32 = arith.constant 0 : i32
    %c0_i32_0 = arith.constant 0 : i32
    %c0_i32_1 = arith.constant 0 : i32
    return %arg0, %c0_i32, %c0_i32_0 : i32, i32, i32
  }
}

</mosaic_0001>

<llo_original>
// kernel: tpu_custom_call.1
$region0: #{tpu_custom_call.1}
  #allocation0 [shape = 'u32[]', space=smem, size = 0x4, offset = 0x4, fixed_abs, tag = 'smem constant byte address 0x4 - core index']
  #allocation1 [shape = 'u32[144,128]{1,0:T(1,128)}', space=vmem, size = 0x12000, scoped, tag = 'internal scratch']
  %s0 = inlined_call_operand.hbm [shape: f32[2,4,256], index: 0, kind: input, shape index: {}]
  %s1 = inlined_call_operand.hbm [shape: f32[4,4], index: 1, kind: input, shape index: {}]
  %s2 = inlined_call_operand.hbm [shape: f32[2,4,256], index: 2, kind: output, shape index: {}]
  %s3 = sld [smem:[#allocation0]]
  $region49: #{tpu_custom_call.1} parent=0
    _
  %s5 = ssub.s32 1, %s3
  %s6 = scalar_select 0, %s5, %s3
  $region1: #{tpu_custom_call.1} parent=0
    #allocation2 [shape = 'u8[8192]{0}', space=vmem, size = 0x2000, scoped, tag = 'input window, operand 0']
    #allocation3 [shape = 's32[2]{0}', space=sflag, size = 0x8, scoped, tag = 'scoped memory for tpu_custom_call.1']
    #allocation4 [shape = 's32[2]{0}', space=sflag, size = 0x8, scoped, tag = 'scoped memory for tpu_custom_call.1']
    #allocation5 [shape = 'u8[2048]{0}', space=vmem, size = 0x800, scoped, tag = 'input window, operand 1, single buffered']
    #allocation6 [shape = 's32[1]{0}', space=sflag, size = 0x4, scoped, tag = 'scoped memory for tpu_custom_call.1']
    #allocation7 [shape = 'u8[8192]{0}', space=vmem, size = 0x2000, scoped, tag = 'output window, operand 0']
    %7 = vsyncpa [#allocation3], 0
    %s8 = scalar_lea.sflag [#allocation3], 1
    %9 = vsyncpa %s8, 0
    %10 = vsyncpa [#allocation6], 0
    %11 = vsyncpa [#allocation4], 0
    %s12 = scalar_lea.sflag [#allocation4], 1
    %13 = vsyncpa %s12, 0
    loop: start=0, step=1, limit=4
    $region2: #{tpu_custom_call.1} parent=1 // loop_pre_header
      _
    $region3: #{tpu_custom_call.1} parent=1 // loop_header
      %s15 = sphi 0, %s19
      %p16 = scmp.ge.s32.totalorder %s15, 4
      %s25 = sphi 0, %s27
      %s28 = sphi 0, %s25
      %s29 = sphi 0, %s28
      %s45 = sphi 0, %s29
      %s49 = sphi 0, %s49
      %s51 = sphi 0, %s49
      %s52 = sphi 0, %s51
      %s66 = sphi 0, %s52
      %s72 = sphi 0, %s74
      %s75 = sphi 0, %s72
      %s76 = sphi 0, %s75
      %s92 = sphi 0, %s76
    $region4: #{tpu_custom_call.1} parent=1 // loop_header_branch
      %18 = sbr.rel (%p16) target = $region8
    $region5: #{tpu_custom_call.1} parent=1 // loop_body
      %s20 = ssub.s32 %s15, 1
      %s21 = ssub.s32 %s15, 2
      %s22 = sadd.s32 %s15, 1
      %s23 = ssub.s32 %s15, %s22
      %p24 = scmp.eq.s32.totalorder %s23, 0
      %s26 = sadd.s32 %s25, 1
      %s27 = scalar_select %p24, %s25, %s26
      %p30 = pneg %p24
      %p31 = scmp.eq.s32.totalorder %s15, 1
      %p32 = por %p30, %p31
      %p33 = scmp.ne.s32.totalorder %s25, %s28
      %p34 = scmp.eq.s32.totalorder %s15, 0
      %p35 = por %p33, %p34
      %p36 = scmp.ne.s32.totalorder %s25, %s28
      %p37 = scmp.eq.s32.totalorder %s20, 1
      %p38 = por %p36, %p37
      %p39 = scmp.ne.s32.totalorder %s28, %s29
      %p40 = scmp.eq.s32.totalorder %s20, 0
      %p41 = por %p39, %p40
      %p42 = scmp.ne.s32.totalorder %s28, %s29
      %p43 = scmp.eq.s32.totalorder %s21, 1
      %p44 = por %p42, %p43
      %p46 = scmp.ne.s32.totalorder %s29, %s45
      %p47 = scmp.eq.s32.totalorder %s21, 0
      %p48 = por %p46, %p47
      %s50 = sadd.s32 %s49, 1
      %p53 = scmp.eq.s32.totalorder %s15, 1
      %p54 = scmp.ne.s32.totalorder %s49, %s51
      %p55 = scmp.eq.s32.totalorder %s15, 0
      %p56 = por %p54, %p55
      %p57 = scmp.ne.s32.totalorder %s49, %s51
      %p58 = scmp.eq.s32.totalorder %s20, 1
      %p59 = por %p57, %p58
      %p60 = scmp.ne.s32.totalorder %s51, %s52
      %p61 = scmp.eq.s32.totalorder %s20, 0
      %p62 = por %p60, %p61
      %p63 = scmp.ne.s32.totalorder %s51, %s52
      %p64 = scmp.eq.s32.totalorder %s21, 1
      %p65 = por %p63, %p64
      %p67 = scmp.ne.s32.totalorder %s52, %s66
      %p68 = scmp.eq.s32.totalorder %s21, 0
      %p69 = por %p67, %p68
      %s70 = ssub.s32 %s15, %s22
      %p71 = scmp.eq.s32.totalorder %s70, 0
      %s73 = sadd.s32 %s72, 1
      %s74 = scalar_select %p71, %s72, %s73
      %p77 = pneg %p71
      %p78 = scmp.eq.s32.totalorder %s15, 1
      %p79 = por %p77, %p78
      %p80 = scmp.ne.s32.totalorder %s72, %s75
      %p81 = scmp.eq.s32.totalorder %s15, 0
      %p82 = por %p80, %p81
      %p83 = scmp.ne.s32.totalorder %s72, %s75
      %p84 = scmp.eq.s32.totalorder %s20, 1
      %p85 = por %p83, %p84
      %p86 = scmp.ne.s32.totalorder %s75, %s76
      %p87 = scmp.eq.s32.totalorder %s20, 0
      %p88 = por %p86, %p87
      %p89 = scmp.ne.s32.totalorder %s75, %s76
      %p90 = scmp.eq.s32.totalorder %s21, 1
      %p91 = por %p89, %p90
      %p93 = scmp.ne.s32.totalorder %s76, %s92
      %p94 = scmp.eq.s32.totalorder %s21, 0
      %p95 = por %p93, %p94
      %p96 = scmp.le.s32.totalorder 1, %s15
      %p97 = scmp.lt.s32.totalorder %s15, 3
      %p98 = pnand %p96, %p97
      %p99 = pneg %p98
      // Predicated region
      $region9: #{tpu_custom_call.1} parent=5 // pred_check
        _
      $region10: #{tpu_custom_call.1} parent=5 // pred_check_branch
        %101 = sbr.rel (%p98) target = $region12
      $region11: #{tpu_custom_call.1} parent=5 // pred_region
        %s102 = ssub.s32 %s15, 1
        // Predicated region
        $region13: #{tpu_custom_call.1} parent=11 // pred_check
          %p103 = pneg %p62
        $region14: #{tpu_custom_call.1} parent=11 // pred_check_branch
          %105 = sbr.rel (%p103) target = $region16
        $region15: #{tpu_custom_call.1} parent=11 // pred_region
          %s107 = ssub.s32 64, 64
          %108 = vsyncadd [#allocation6], %s107
          %s110 = sshll.u32 [#allocation5], 4
          %s111 = int_to_ptr.vmem [resolvable:$true] %s110
          %113 = dma.hbm_to_vmem [thread:$0]  %s1, 64, %s111, [#allocation6]
        $region16: #{tpu_custom_call.1} parent=11 // pred_fallthru
          _
      $region12: #{tpu_custom_call.1} parent=5 // pred_fallthru
        _
      %p114 = scmp.lt.s32.totalorder %s15, 2
      // Predicated region
      $region17: #{tpu_custom_call.1} parent=5 // pred_check
        %p115 = pneg %p114
      $region18: #{tpu_custom_call.1} parent=5 // pred_check_branch
        %117 = sbr.rel (%p115) target = $region20
      $region19: #{tpu_custom_call.1} parent=5 // pred_region
        // Predicated region
        $region21: #{tpu_custom_call.1} parent=19 // pred_check
          %p118 = pneg %p35
        $region22: #{tpu_custom_call.1} parent=19 // pred_check_branch
          %120 = sbr.rel (%p118) target = $region24
        $region23: #{tpu_custom_call.1} parent=19 // pred_region
          %s121 = sand.u32 %s25, 1
          %s122 = scalar_lea.sflag [#allocation3], %s121
          %s123 = sand.u32 %s25, 1
          %s124 = smul.addr %s123, 8
          %s125 = scalar_lea.vmem [#allocation2], %s124
          %s127 = ssub.s32 128, 128
          %128 = vsyncadd %s122, %s127
          %s129 = smul.addr %s15, 2
          %s130 = smul.addr %s129, 64
          %s131 = scalar_lea.hbm %s0, %s130
          %s133 = sshll.u32 %s125, 4
          %s134 = int_to_ptr.vmem [resolvable:$true] %s133
          %136 = dma.hbm_to_vmem [thread:$0]  %s131, 128, %s134, %s122
        $region24: #{tpu_custom_call.1} parent=19 // pred_fallthru
          _
      $region20: #{tpu_custom_call.1} parent=5 // pred_fallthru
        _
      %p137 = scmp.le.s32.totalorder 1, %s15
      %p138 = scmp.lt.s32.totalorder %s15, 3
      %p139 = pnand %p137, %p138
      %p140 = pneg %p139
      // Predicated region
      $region25: #{tpu_custom_call.1} parent=5 // pred_check
        _
      $region26: #{tpu_custom_call.1} parent=5 // pred_check_branch
        %142 = sbr.rel (%p139) target = $region28
      $region27: #{tpu_custom_call.1} parent=5 // pred_region
        %s143 = ssub.s32 %s15, 1
        %s144 = sand.u32 %s28, 1
        %s145 = scalar_lea.sflag [#allocation3], %s144
        %s146 = sand.u32 %s28, 1
        %s147 = smul.addr %s146, 8
        %s148 = scalar_lea.vmem [#allocation2], %s147
        // Predicated region
        $region29: #{tpu_custom_call.1} parent=27 // pred_check
          %p149 = pneg %p41
        $region30: #{tpu_custom_call.1} parent=27 // pred_check_branch
          %151 = sbr.rel (%p149) target = $region32
        $region31: #{tpu_custom_call.1} parent=27 // pred_region
          %152 = dma.done %s145, 128
        $region32: #{tpu_custom_call.1} parent=27 // pred_fallthru
          _
        // Predicated region
        $region33: #{tpu_custom_call.1} parent=27 // pred_check
          %p153 = pneg %p62
        $region34: #{tpu_custom_call.1} parent=27 // pred_check_branch
          %155 = sbr.rel (%p153) target = $region36
        $region35: #{tpu_custom_call.1} parent=27 // pred_region
          %156 = dma.done [#allocation6], 64
        $region36: #{tpu_custom_call.1} parent=27 // pred_fallthru
          _
        %s157 = sand.u32 %s28, 1
        %s158 = scalar_lea.sflag [#allocation3], %s157
        %s159 = sand.u32 %s28, 1
        %s160 = smul.addr %s159, 8
        %s161 = scalar_lea.vmem [#allocation2], %s160
        %p162 = pneg %p41
        %p163 = pneg %p38
        %p164 = pneg %p62
        %p165 = pneg %p59
        %p166 = pneg %p88
        %p167 = pneg %p85
        %s168 = sand.u32 %s75, 1
        %s169 = scalar_lea.sflag [#allocation4], %s168
        %s170 = sand.u32 %s75, 1
        %s171 = smul.addr %s170, 8
        %s172 = scalar_lea.vmem [#allocation7], %s171
        %v173 = vld [vmem:[%s148] sm:$0xff]
        %v175 = vcombine.high %v173, %v173
        %vm177 = vcmask 1043456
        %v178 = vsel %vm177, %v173, 0.0
        %v179 = vsel %vm177, %v175, 0.0
        %v180 = vadd.f32 %v178, %v179
        %181 = vadd.xlane.f32.xlu0 %v180
        %v182 = vpop.xlane.xlu0 %181
        %v183 = vmul.f32 %v182, 0.00390625
        %v184 = vld [vmem:[#allocation5] sm:$0xf]
        %v186 = vlaneseq
        %v187 = vand.u32 %v186, 127
        %v188 = vlaneseq
        %v189 = vshrl.u32 %v188, 7
        %v190 = vsub.s32 %v187, %v189
        %v191 = vrot.slane %v183, %v190
        %vm192 = vcmask 31744
        %v193 = vsel %vm192, %v191, 0
        %v196 = vsel %vm192, %v184, 0
        %198 = vmatprep.subr.mxu0 0.0
        %199 = vmatpush1.xpose.msra.mxu0 0.0
        %200 = vmatprep.subr.mxu0 0.0
        %201 = vmatpush1.xpose.msra.mxu0 0.0
        %202 = vmatprep.subr.mxu0 0.0
        %203 = vmatpush1.xpose.msra.mxu0 0.0
        %204 = vmatprep.subr.mxu0 0.0
        %205 = vmatpush1.xpose.msra.mxu0 0.0
        %206 = vmatprep.subr.mxu0 0.0
        %207 = vmatpush1.xpose.msra.mxu0 0.0
        %208 = vmatprep.subr.mxu0 0.0
        %209 = vmatpush1.xpose.msra.mxu0 0.0
        %210 = vmatprep.subr.mxu0 0.0
        %211 = vmatpush1.xpose.msra.mxu0 0.0
        %212 = vmatprep.subr.mxu0 0.0
        %213 = vmatpush1.xpose.msra.mxu0 0.0
        %214 = vmatprep.subr.mxu0 0.0
        %215 = vmatpush1.xpose.msra.mxu0 0.0
        %216 = vmatprep.subr.mxu0 0.0
        %217 = vmatpush1.xpose.msra.mxu0 0.0
        %218 = vmatprep.subr.mxu0 0.0
        %219 = vmatpush1.xpose.msra.mxu0 0.0
        %220 = vmatprep.subr.mxu0 0.0
        %221 = vmatpush1.xpose.msra.mxu0 0.0
        %222 = vmatprep.subr.mxu0 0.0
        %223 = vmatpush1.xpose.msra.mxu0 0.0
        %224 = vmatprep.subr.mxu0 0.0
        %225 = vmatpush1.xpose.msra.mxu0 0.0
        %226 = vmatprep.subr.mxu0 0.0
        %227 = vmatpush1.xpose.msra.mxu0 0.0
        %228 = vmatprep.subr.mxu0 0.0
        %v229 = vand.u32 %v196, 4294901760
        %230 = vmatpush1.xpose.msra.mxu0 %v229
        %231 = vmatprep.subr.mxu0 0.0
        %232 = vmatpush2.xpose.msra.mxu0 0.0
        %233 = vmatprep.subr.mxu0 0.0
        %234 = vmatpush2.xpose.msra.mxu0 0.0
        %235 = vmatprep.subr.mxu0 0.0
        %236 = vmatpush2.xpose.msra.mxu0 0.0
        %237 = vmatprep.subr.mxu0 0.0
        %238 = vmatpush2.xpose.msra.mxu0 0.0
        %239 = vmatprep.subr.mxu0 0.0
        %240 = vmatpush2.xpose.msra.mxu0 0.0
        %241 = vmatprep.subr.mxu0 0.0
        %242 = vmatpush2.xpose.msra.mxu0 0.0
        %243 = vmatprep.subr.mxu0 0.0
        %244 = vmatpush2.xpose.msra.mxu0 0.0
        %245 = vmatprep.subr.mxu0 0.0
        %246 = vmatpush2.xpose.msra.mxu0 0.0
        %247 = vmatprep.subr.mxu0 0.0
        %248 = vmatpush2.xpose.msra.mxu0 0.0
        %249 = vmatprep.subr.mxu0 0.0
        %250 = vmatpush2.xpose.msra.mxu0 0.0
        %251 = vmatprep.subr.mxu0 0.0
        %252 = vmatpush2.xpose.msra.mxu0 0.0
        %253 = vmatprep.subr.mxu0 0.0
        %254 = vmatpush2.xpose.msra.mxu0 0.0
        %255 = vmatprep.subr.mxu0 0.0
        %256 = vmatpush2.xpose.msra.mxu0 0.0
        %257 = vmatprep.subr.mxu0 0.0
        %258 = vmatpush2.xpose.msra.mxu0 0.0
        %259 = vmatprep.subr.mxu0 0.0
        %260 = vmatpush2.xpose.msra.mxu0 0.0
        %261 = vmatprep.subr.mxu0 0.0
        %262 = vmatpush2.xpose.msra.mxu0 0.0
        %263 = vmatprep.mubr.f32.mxu0 0.0
        %v264 = vand.u32 %v193, 4294901760
        %v265 = vsub.f32 %v193, %v264
        %v266 = vand.u32 %v265, 4294901760
        %v267 = vsub.f32 %v265, %v266
        %v268 = vand.u32 %v267, 4294901760
        %269 = vmatmul.mubr.f32.gmra.mxu0 %v268
        %v270 = vpop.f32.mrf.mxu0
        %v271 = vadd.f32 0.0, %v270
        %v272 = vpop.f32.mrf.mxu0
        %273 = vdwg.mxu0
        %274 = vmatprep.subr.mxu0 0.0
        %275 = vmatpush1.xpose.msra.mxu0 0.0
        %276 = vmatprep.subr.mxu0 0.0
        %277 = vmatpush1.xpose.msra.mxu0 0.0
        %278 = vmatprep.subr.mxu0 0.0
        %279 = vmatpush1.xpose.msra.mxu0 0.0
        %280 = vmatprep.subr.mxu0 0.0
        %281 = vmatpush1.xpose.msra.mxu0 0.0
        %282 = vmatprep.subr.mxu0 0.0
        %283 = vmatpush1.xpose.msra.mxu0 0.0
        %284 = vmatprep.subr.mxu0 0.0
        %285 = vmatpush1.xpose.msra.mxu0 0.0
        %286 = vmatprep.subr.mxu0 0.0
        %287 = vmatpush1.xpose.msra.mxu0 0.0
        %288 = vmatprep.subr.mxu0 0.0
        %289 = vmatpush1.xpose.msra.mxu0 0.0
        %290 = vmatprep.subr.mxu0 0.0
        %291 = vmatpush1.xpose.msra.mxu0 0.0
        %292 = vmatprep.subr.mxu0 0.0
        %293 = vmatpush1.xpose.msra.mxu0 0.0
        %294 = vmatprep.subr.mxu0 0.0
        %295 = vmatpush1.xpose.msra.mxu0 0.0
        %296 = vmatprep.subr.mxu0 0.0
        %297 = vmatpush1.xpose.msra.mxu0 0.0
        %298 = vmatprep.subr.mxu0 0.0
        %299 = vmatpush1.xpose.msra.mxu0 0.0
        %300 = vmatprep.subr.mxu0 0.0
        %301 = vmatpush1.xpose.msra.mxu0 0.0
        %302 = vmatprep.subr.mxu0 0.0
        %303 = vmatpush1.xpose.msra.mxu0 0.0
        %304 = vmatprep.subr.mxu0 0.0
        %v305 = vand.u32 %v196, 4294901760
        %v306 = vsub.f32 %v196, %v305
        %v307 = vand.u32 %v306, 4294901760
        %v308 = vsub.f32 %v306, %v307
        %v309 = vand.u32 %v308, 4294901760
        %310 = vmatpush1.xpose.msra.mxu0 %v309
        %311 = vmatprep.subr.mxu0 0.0
        %312 = vmatpush2.xpose.msra.mxu0 0.0
        %313 = vmatprep.subr.mxu0 0.0
        %314 = vmatpush2.xpose.msra.mxu0 0.0
        %315 = vmatprep.subr.mxu0 0.0
        %316 = vmatpush2.xpose.msra.mxu0 0.0
        %317 = vmatprep.subr.mxu0 0.0
        %318 = vmatpush2.xpose.msra.mxu0 0.0
        %319 = vmatprep.subr.mxu0 0.0
        %320 = vmatpush2.xpose.msra.mxu0 0.0
        %321 = vmatprep.subr.mxu0 0.0
        %322 = vmatpush2.xpose.msra.mxu0 0.0
        %323 = vmatprep.subr.mxu0 0.0
        %324 = vmatpush2.xpose.msra.mxu0 0.0
        %325 = vmatprep.subr.mxu0 0.0
        %326 = vmatpush2.xpose.msra.mxu0 0.0
        %327 = vmatprep.subr.mxu0 0.0
        %328 = vmatpush2.xpose.msra.mxu0 0.0
        %329 = vmatprep.subr.mxu0 0.0
        %330 = vmatpush2.xpose.msra.mxu0 0.0
        %331 = vmatprep.subr.mxu0 0.0
        %332 = vmatpush2.xpose.msra.mxu0 0.0
        %333 = vmatprep.subr.mxu0 0.0
        %334 = vmatpush2.xpose.msra.mxu0 0.0
        %335 = vmatprep.subr.mxu0 0.0
        %336 = vmatpush2.xpose.msra.mxu0 0.0
        %337 = vmatprep.subr.mxu0 0.0
        %338 = vmatpush2.xpose.msra.mxu0 0.0
        %339 = vmatprep.subr.mxu0 0.0
        %340 = vmatpush2.xpose.msra.mxu0 0.0
        %341 = vmatprep.subr.mxu0 0.0
        %342 = vmatpush2.xpose.msra.mxu0 0.0
        %343 = vmatprep.mubr.f32.mxu0 0.0
        %v344 = vand.u32 %v193, 4294901760
        %345 = vmatmul.mubr.f32.gmra.mxu0 %v344
        %v346 = vpop.f32.mrf.mxu0
        %v347 = vadd.f32 %v271, %v346
        %v348 = vpop.f32.mrf.mxu0
        %349 = vdwg.mxu0
        %350 = vmatprep.subr.mxu0 0.0
        %351 = vmatpush1.xpose.msra.mxu0 0.0
        %352 = vmatprep.subr.mxu0 0.0
        %353 = vmatpush1.xpose.msra.mxu0 0.0
        %354 = vmatprep.subr.mxu0 0.0
        %355 = vmatpush1.xpose.msra.mxu0 0.0
        %356 = vmatprep.subr.mxu0 0.0
        %357 = vmatpush1.xpose.msra.mxu0 0.0
        %358 = vmatprep.subr.mxu0 0.0
        %359 = vmatpush1.xpose.msra.mxu0 0.0
        %360 = vmatprep.subr.mxu0 0.0
        %361 = vmatpush1.xpose.msra.mxu0 0.0
        %362 = vmatprep.subr.mxu0 0.0
        %363 = vmatpush1.xpose.msra.mxu0 0.0
        %364 = vmatprep.subr.mxu0 0.0
        %365 = vmatpush1.xpose.msra.mxu0 0.0
        %366 = vmatprep.subr.mxu0 0.0
        %367 = vmatpush1.xpose.msra.mxu0 0.0
        %368 = vmatprep.subr.mxu0 0.0
        %369 = vmatpush1.xpose.msra.mxu0 0.0
        %370 = vmatprep.subr.mxu0 0.0
        %371 = vmatpush1.xpose.msra.mxu0 0.0
        %372 = vmatprep.subr.mxu0 0.0
        %373 = vmatpush1.xpose.msra.mxu0 0.0
        %374 = vmatprep.subr.mxu0 0.0
        %375 = vmatpush1.xpose.msra.mxu0 0.0
        %376 = vmatprep.subr.mxu0 0.0
        %377 = vmatpush1.xpose.msra.mxu0 0.0
        %378 = vmatprep.subr.mxu0 0.0
        %379 = vmatpush1.xpose.msra.mxu0 0.0
        %380 = vmatprep.subr.mxu0 0.0
        %v381 = vand.u32 %v196, 4294901760
        %v382 = vsub.f32 %v196, %v381
        %383 = vmatpush1.xpose.msra.mxu0 %v382
        %384 = vmatprep.subr.mxu0 0.0
        %385 = vmatpush2.xpose.msra.mxu0 0.0
        %386 = vmatprep.subr.mxu0 0.0
        %387 = vmatpush2.xpose.msra.mxu0 0.0
        %388 = vmatprep.subr.mxu0 0.0
        %389 = vmatpush2.xpose.msra.mxu0 0.0
        %390 = vmatprep.subr.mxu0 0.0
        %391 = vmatpush2.xpose.msra.mxu0 0.0
        %392 = vmatprep.subr.mxu0 0.0
        %393 = vmatpush2.xpose.msra.mxu0 0.0
        %394 = vmatprep.subr.mxu0 0.0
        %395 = vmatpush2.xpose.msra.mxu0 0.0
        %396 = vmatprep.subr.mxu0 0.0
        %397 = vmatpush2.xpose.msra.mxu0 0.0
        %398 = vmatprep.subr.mxu0 0.0
        %399 = vmatpush2.xpose.msra.mxu0 0.0
        %400 = vmatprep.subr.mxu0 0.0
        %401 = vmatpush2.xpose.msra.mxu0 0.0
        %402 = vmatprep.subr.mxu0 0.0
        %403 = vmatpush2.xpose.msra.mxu0 0.0
        %404 = vmatprep.subr.mxu0 0.0
        %405 = vmatpush2.xpose.msra.mxu0 0.0
        %406 = vmatprep.subr.mxu0 0.0
        %407 = vmatpush2.xpose.msra.mxu0 0.0
        %408 = vmatprep.subr.mxu0 0.0
        %409 = vmatpush2.xpose.msra.mxu0 0.0
        %410 = vmatprep.subr.mxu0 0.0
        %411 = vmatpush2.xpose.msra.mxu0 0.0
        %412 = vmatprep.subr.mxu0 0.0
        %413 = vmatpush2.xpose.msra.mxu0 0.0
        %414 = vmatprep.subr.mxu0 0.0
        %415 = vmatpush2.xpose.msra.mxu0 0.0
        %416 = vmatprep.mubr.f32.mxu0 0.0
        %v417 = vand.u32 %v193, 4294901760
        %v418 = vsub.f32 %v193, %v417
        %419 = vmatmul.mubr.f32.gmra.mxu0 %v418
        %v420 = vpop.f32.mrf.mxu0
        %v421 = vadd.f32 %v347, %v420
        %v422 = vpop.f32.mrf.mxu0
        %423 = vdwg.mxu0
        %424 = vmatprep.subr.mxu0 0.0
        %425 = vmatpush1.xpose.msra.mxu0 0.0
        %426 = vmatprep.subr.mxu0 0.0
        %427 = vmatpush1.xpose.msra.mxu0 0.0
        %428 = vmatprep.subr.mxu0 0.0
        %429 = vmatpush1.xpose.msra.mxu0 0.0
        %430 = vmatprep.subr.mxu0 0.0
        %431 = vmatpush1.xpose.msra.mxu0 0.0
        %432 = vmatprep.subr.mxu0 0.0
        %433 = vmatpush1.xpose.msra.mxu0 0.0
        %434 = vmatprep.subr.mxu0 0.0
        %435 = vmatpush1.xpose.msra.mxu0 0.0
        %436 = vmatprep.subr.mxu0 0.0
        %437 = vmatpush1.xpose.msra.mxu0 0.0
        %438 = vmatprep.subr.mxu0 0.0
        %439 = vmatpush1.xpose.msra.mxu0 0.0
        %440 = vmatprep.subr.mxu0 0.0
        %441 = vmatpush1.xpose.msra.mxu0 0.0
        %442 = vmatprep.subr.mxu0 0.0
        %443 = vmatpush1.xpose.msra.mxu0 0.0
        %444 = vmatprep.subr.mxu0 0.0
        %445 = vmatpush1.xpose.msra.mxu0 0.0
        %446 = vmatprep.subr.mxu0 0.0
        %447 = vmatpush1.xpose.msra.mxu0 0.0
        %448 = vmatprep.subr.mxu0 0.0
        %449 = vmatpush1.xpose.msra.mxu0 0.0
        %450 = vmatprep.subr.mxu0 0.0
        %451 = vmatpush1.xpose.msra.mxu0 0.0
        %452 = vmatprep.subr.mxu0 0.0
        %453 = vmatpush1.xpose.msra.mxu0 0.0
        %454 = vmatprep.subr.mxu0 0.0
        %v455 = vand.u32 %v196, 4294901760
        %456 = vmatpush1.xpose.msra.mxu0 %v455
        %457 = vmatprep.subr.mxu0 0.0
        %458 = vmatpush2.xpose.msra.mxu0 0.0
        %459 = vmatprep.subr.mxu0 0.0
        %460 = vmatpush2.xpose.msra.mxu0 0.0
        %461 = vmatprep.subr.mxu0 0.0
        %462 = vmatpush2.xpose.msra.mxu0 0.0
        %463 = vmatprep.subr.mxu0 0.0
        %464 = vmatpush2.xpose.msra.mxu0 0.0
        %465 = vmatprep.subr.mxu0 0.0
        %466 = vmatpush2.xpose.msra.mxu0 0.0
        %467 = vmatprep.subr.mxu0 0.0
        %468 = vmatpush2.xpose.msra.mxu0 0.0
        %469 = vmatprep.subr.mxu0 0.0
        %470 = vmatpush2.xpose.msra.mxu0 0.0
        %471 = vmatprep.subr.mxu0 0.0
        %472 = vmatpush2.xpose.msra.mxu0 0.0
        %473 = vmatprep.subr.mxu0 0.0
        %474 = vmatpush2.xpose.msra.mxu0 0.0
        %475 = vmatprep.subr.mxu0 0.0
        %476 = vmatpush2.xpose.msra.mxu0 0.0
        %477 = vmatprep.subr.mxu0 0.0
        %478 = vmatpush2.xpose.msra.mxu0 0.0
        %479 = vmatprep.subr.mxu0 0.0
        %480 = vmatpush2.xpose.msra.mxu0 0.0
        %481 = vmatprep.subr.mxu0 0.0
        %482 = vmatpush2.xpose.msra.mxu0 0.0
        %483 = vmatprep.subr.mxu0 0.0
        %484 = vmatpush2.xpose.msra.mxu0 0.0
        %485 = vmatprep.subr.mxu0 0.0
        %486 = vmatpush2.xpose.msra.mxu0 0.0
        %487 = vmatprep.subr.mxu0 0.0
        %488 = vmatpush2.xpose.msra.mxu0 0.0
        %489 = vmatprep.mubr.f32.mxu0 0.0
        %v490 = vand.u32 %v193, 4294901760
        %v491 = vsub.f32 %v193, %v490
        %v492 = vand.u32 %v491, 4294901760
        %493 = vmatmul.mubr.f32.gmra.mxu0 %v492
        %v494 = vpop.f32.mrf.mxu0
        %v495 = vadd.f32 %v421, %v494
        %v496 = vpop.f32.mrf.mxu0
        %497 = vdwg.mxu0
        %498 = vmatprep.subr.mxu0 0.0
        %499 = vmatpush1.xpose.msra.mxu0 0.0
        %500 = vmatprep.subr.mxu0 0.0
        %501 = vmatpush1.xpose.msra.mxu0 0.0
        %502 = vmatprep.subr.mxu0 0.0
        %503 = vmatpush1.xpose.msra.mxu0 0.0
        %504 = vmatprep.subr.mxu0 0.0
        %505 = vmatpush1.xpose.msra.mxu0 0.0
        %506 = vmatprep.subr.mxu0 0.0
        %507 = vmatpush1.xpose.msra.mxu0 0.0
        %508 = vmatprep.subr.mxu0 0.0
        %509 = vmatpush1.xpose.msra.mxu0 0.0
        %510 = vmatprep.subr.mxu0 0.0
        %511 = vmatpush1.xpose.msra.mxu0 0.0
        %512 = vmatprep.subr.mxu0 0.0
        %513 = vmatpush1.xpose.msra.mxu0 0.0
        %514 = vmatprep.subr.mxu0 0.0
        %515 = vmatpush1.xpose.msra.mxu0 0.0
        %516 = vmatprep.subr.mxu0 0.0
        %517 = vmatpush1.xpose.msra.mxu0 0.0
        %518 = vmatprep.subr.mxu0 0.0
        %519 = vmatpush1.xpose.msra.mxu0 0.0
        %520 = vmatprep.subr.mxu0 0.0
        %521 = vmatpush1.xpose.msra.mxu0 0.0
        %522 = vmatprep.subr.mxu0 0.0
        %523 = vmatpush1.xpose.msra.mxu0 0.0
        %524 = vmatprep.subr.mxu0 0.0
        %525 = vmatpush1.xpose.msra.mxu0 0.0
        %526 = vmatprep.subr.mxu0 0.0
        %527 = vmatpush1.xpose.msra.mxu0 0.0
        %528 = vmatprep.subr.mxu0 0.0
        %v529 = vand.u32 %v196, 4294901760
        %v530 = vsub.f32 %v196, %v529
        %v531 = vand.u32 %v530, 4294901760
        %532 = vmatpush1.xpose.msra.mxu0 %v531
        %533 = vmatprep.subr.mxu0 0.0
        %534 = vmatpush2.xpose.msra.mxu0 0.0
        %535 = vmatprep.subr.mxu0 0.0
        %536 = vmatpush2.xpose.msra.mxu0 0.0
        %537 = vmatprep.subr.mxu0 0.0
        %538 = vmatpush2.xpose.msra.mxu0 0.0
        %539 = vmatprep.subr.mxu0 0.0
        %540 = vmatpush2.xpose.msra.mxu0 0.0
        %541 = vmatprep.subr.mxu0 0.0
        %542 = vmatpush2.xpose.msra.mxu0 0.0
        %543 = vmatprep.subr.mxu0 0.0
        %544 = vmatpush2.xpose.msra.mxu0 0.0
        %545 = vmatprep.subr.mxu0 0.0
        %546 = vmatpush2.xpose.msra.mxu0 0.0
        %547 = vmatprep.subr.mxu0 0.0
        %548 = vmatpush2.xpose.msra.mxu0 0.0
        %549 = vmatprep.subr.mxu0 0.0
        %550 = vmatpush2.xpose.msra.mxu0 0.0
        %551 = vmatprep.subr.mxu0 0.0
        %552 = vmatpush2.xpose.msra.mxu0 0.0
        %553 = vmatprep.subr.mxu0 0.0
        %554 = vmatpush2.xpose.msra.mxu0 0.0
        %555 = vmatprep.subr.mxu0 0.0
        %556 = vmatpush2.xpose.msra.mxu0 0.0
        %557 = vmatprep.subr.mxu0 0.0
        %558 = vmatpush2.xpose.msra.mxu0 0.0
        %559 = vmatprep.subr.mxu0 0.0
        %560 = vmatpush2.xpose.msra.mxu0 0.0
        %561 = vmatprep.subr.mxu0 0.0
        %562 = vmatpush2.xpose.msra.mxu0 0.0
        %563 = vmatprep.subr.mxu0 0.0
        %564 = vmatpush2.xpose.msra.mxu0 0.0
        %565 = vmatprep.mubr.f32.mxu0 0.0
        %v566 = vand.u32 %v193, 4294901760
        %567 = vmatmul.mubr.f32.gmra.mxu0 %v566
        %v568 = vpop.f32.mrf.mxu0
        %v569 = vadd.f32 %v495, %v568
        %v570 = vpop.f32.mrf.mxu0
        %571 = vdwg.mxu0
        %572 = vmatprep.subr.mxu0 0.0
        %573 = vmatpush1.xpose.msra.mxu0 0.0
        %574 = vmatprep.subr.mxu0 0.0
        %575 = vmatpush1.xpose.msra.mxu0 0.0
        %576 = vmatprep.subr.mxu0 0.0
        %577 = vmatpush1.xpose.msra.mxu0 0.0
        %578 = vmatprep.subr.mxu0 0.0
        %579 = vmatpush1.xpose.msra.mxu0 0.0
        %580 = vmatprep.subr.mxu0 0.0
        %581 = vmatpush1.xpose.msra.mxu0 0.0
        %582 = vmatprep.subr.mxu0 0.0
        %583 = vmatpush1.xpose.msra.mxu0 0.0
        %584 = vmatprep.subr.mxu0 0.0
        %585 = vmatpush1.xpose.msra.mxu0 0.0
        %586 = vmatprep.subr.mxu0 0.0
        %587 = vmatpush1.xpose.msra.mxu0 0.0
        %588 = vmatprep.subr.mxu0 0.0
        %589 = vmatpush1.xpose.msra.mxu0 0.0
        %590 = vmatprep.subr.mxu0 0.0
        %591 = vmatpush1.xpose.msra.mxu0 0.0
        %592 = vmatprep.subr.mxu0 0.0
        %593 = vmatpush1.xpose.msra.mxu0 0.0
        %594 = vmatprep.subr.mxu0 0.0
        %595 = vmatpush1.xpose.msra.mxu0 0.0
        %596 = vmatprep.subr.mxu0 0.0
        %597 = vmatpush1.xpose.msra.mxu0 0.0
        %598 = vmatprep.subr.mxu0 0.0
        %599 = vmatpush1.xpose.msra.mxu0 0.0
        %600 = vmatprep.subr.mxu0 0.0
        %601 = vmatpush1.xpose.msra.mxu0 0.0
        %602 = vmatprep.subr.mxu0 0.0
        %v603 = vand.u32 %v196, 4294901760
        %604 = vmatpush1.xpose.msra.mxu0 %v603
        %605 = vmatprep.subr.mxu0 0.0
        %606 = vmatpush2.xpose.msra.mxu0 0.0
        %607 = vmatprep.subr.mxu0 0.0
        %608 = vmatpush2.xpose.msra.mxu0 0.0
        %609 = vmatprep.subr.mxu0 0.0
        %610 = vmatpush2.xpose.msra.mxu0 0.0
        %611 = vmatprep.subr.mxu0 0.0
        %612 = vmatpush2.xpose.msra.mxu0 0.0
        %613 = vmatprep.subr.mxu0 0.0
        %614 = vmatpush2.xpose.msra.mxu0 0.0
        %615 = vmatprep.subr.mxu0 0.0
        %616 = vmatpush2.xpose.msra.mxu0 0.0
        %617 = vmatprep.subr.mxu0 0.0
        %618 = vmatpush2.xpose.msra.mxu0 0.0
        %619 = vmatprep.subr.mxu0 0.0
        %620 = vmatpush2.xpose.msra.mxu0 0.0
        %621 = vmatprep.subr.mxu0 0.0
        %622 = vmatpush2.xpose.msra.mxu0 0.0
        %623 = vmatprep.subr.mxu0 0.0
        %624 = vmatpush2.xpose.msra.mxu0 0.0
        %625 = vmatprep.subr.mxu0 0.0
        %626 = vmatpush2.xpose.msra.mxu0 0.0
        %627 = vmatprep.subr.mxu0 0.0
        %628 = vmatpush2.xpose.msra.mxu0 0.0
        %629 = vmatprep.subr.mxu0 0.0
        %630 = vmatpush2.xpose.msra.mxu0 0.0
        %631 = vmatprep.subr.mxu0 0.0
        %632 = vmatpush2.xpose.msra.mxu0 0.0
        %633 = vmatprep.subr.mxu0 0.0
        %634 = vmatpush2.xpose.msra.mxu0 0.0
        %635 = vmatprep.subr.mxu0 0.0
        %636 = vmatpush2.xpose.msra.mxu0 0.0
        %637 = vmatprep.mubr.f32.mxu0 0.0
        %v638 = vand.u32 %v193, 4294901760
        %639 = vmatmul.mubr.f32.gmra.mxu0 %v638
        %v640 = vpop.f32.mrf.mxu0
        %v641 = vadd.f32 %v569, %v640
        %v642 = vpop.f32.mrf.mxu0
        %643 = vdwg.mxu0
        %v644 = vxor.u32 %v641, 2147483648
        %v645 = vmul.f32 %v644, 1.442695
        %v646 = vpow.pop %v645
        %v647 = vadd.f32 %v646, 1.0
        %v648 = vrcp.pop %v647
        %v649 = vmul.f32 1.0, %v648
        %v650 = vlaneseq
        %v651 = vshrl.u32 %v650, 7
        %v652 = vsub.s32 0, %v651
        %v653 = vrot.slane %v649, %v652
        %655 = vbcast.lane.b32.xlu0 %v653, 256
        %v656 = vpop.permute.xlu0 %655
        %v659 = vunpack.c.l.s4 839922192
        %v660 = vunpack.c.0.s8 %v659
        %v661 = vlaneseq
        %v662 = vshrl.u32 %v661, 7
        %v663 = vsub.s32 %v660, %v662
        %v664 = vrot.slane %v656, %v663
        %v666 = vmul.f32 %v173, %v664
        %667 = vst [vmem:[%s172] sm:$0xff] %v666
        %s668 = sand.u32 %s75, 1
        %s669 = scalar_lea.sflag [#allocation4], %s668
        %s670 = sand.u32 %s75, 1
        %s671 = smul.addr %s670, 8
        %s672 = scalar_lea.vmem [#allocation7], %s671
        // Predicated region
        $region37: #{tpu_custom_call.1} parent=27 // pred_check
          %p673 = pneg %p85
        $region38: #{tpu_custom_call.1} parent=27 // pred_check_branch
          %675 = sbr.rel (%p673) target = $region40
        $region39: #{tpu_custom_call.1} parent=27 // pred_region
          %s677 = ssub.s32 128, 128
          %678 = vsyncadd %s669, %s677
          %s679 = smul.addr %s20, 2
          %s680 = smul.addr %s679, 64
          %s681 = scalar_lea.hbm %s2, %s680
          %s683 = sshll.u32 %s672, 4
          %s684 = int_to_ptr.vmem [resolvable:$true] %s683
          %686 = dma.vmem_to_hbm [thread:$0]  %s684, 128, %s681, %s669
        $region40: #{tpu_custom_call.1} parent=27 // pred_fallthru
          _
      $region28: #{tpu_custom_call.1} parent=5 // pred_fallthru
        _
      %p687 = scmp.le.s32.totalorder 2, %s15
      // Predicated region
      $region41: #{tpu_custom_call.1} parent=5 // pred_check
        %p688 = pneg %p687
      $region42: #{tpu_custom_call.1} parent=5 // pred_check_branch
        %690 = sbr.rel (%p688) target = $region44
      $region43: #{tpu_custom_call.1} parent=5 // pred_region
        %s691 = ssub.s32 %s15, 2
        // Predicated region
        $region45: #{tpu_custom_call.1} parent=43 // pred_check
          %p692 = pneg %p91
        $region46: #{tpu_custom_call.1} parent=43 // pred_check_branch
          %694 = sbr.rel (%p692) target = $region48
        $region47: #{tpu_custom_call.1} parent=43 // pred_region
          %s695 = sand.u32 %s76, 1
          %s696 = scalar_lea.sflag [#allocation4], %s695
          %s697 = sand.u32 %s76, 1
          %s698 = smul.addr %s697, 8
          %s699 = scalar_lea.vmem [#allocation7], %s698
          %700 = dma.done %s696, 128
        $region48: #{tpu_custom_call.1} parent=43 // pred_fallthru
          _
      $region44: #{tpu_custom_call.1} parent=5 // pred_fallthru
        _
    $region6: #{tpu_custom_call.1} parent=1 // loop_footer
      %s19 = sadd.s32 1, %s15
    $region7: #{tpu_custom_call.1} parent=1 // loop_footer_branch
      %14 = sbr.rel target = $region3
    $region8: #{tpu_custom_call.1} parent=1 // loop_exit
      _
    %701 = vsyncpa [#allocation3], 1
    %s702 = scalar_lea.sflag [#allocation3], 1
    %703 = vsyncpa %s702, 1
    %704 = vsyncpa [#allocation6], 1
    %705 = vsyncpa [#allocation4], 1
    %s706 = scalar_lea.sflag [#allocation4], 1
    %707 = vsyncpa %s706, 1

</llo_original>
